<compile_context>
chip_gen: v6e
topology: v6e:2x2x1
jax: 0.10.0
libtpu: 0.0.40
codegen_flags: <defaults>
</compile_context>

<pallas_src>
import numpy as np
import jax
import jax.numpy as jnp
from jax import lax
from jax.experimental import pallas as pl
from jax.experimental.pallas import tpu as pltpu

# Laplacian kernel (same as the PyTorch script); bias is zero.
K_NP = np.array([[0, 1, 0], [1, -4, 1], [0, 1, 0]], dtype=np.float32)


def _laplacian3x3_kernel(x_ref, o_ref):
    # x_ref / o_ref: (B_TILE * Hp, Wp) f32 tiles in VMEM (lane-dense).
    x = x_ref[...]
    rows, wp = x.shape
    # Symmetric +1 / -1 shifts via XLU rotations.  Using {1, size-1} keeps the
    # sum independent of the roll direction convention and avoids negative
    # shifts.  Wrapped edges only pollute rows/cols that the wrapper crops.
    up = pltpu.roll(x, 1, 0)
    down = pltpu.roll(x, rows - 1, 0)
    left = pltpu.roll(x, 1, 1)
    right = pltpu.roll(x, wp - 1, 1)
    # Laplacian taps baked in (corners are zero, bias is zero).
    o_ref[...] = (up + down) + (left + right) - 4.0 * x


def _round_up(v, m):
    return (v + m - 1) // m * m


def _choose_batch_tile(n, hp, wp, tile_budget_bytes=2 * 1024 * 1024):
    """Images per grid step: amortize step overhead but stay VMEM-friendly and
    keep >= 2 grid steps when n >= 2 so both v7x TensorCores get work."""
    bytes_per_image = hp * wp * 4
    max_tile = max(1, tile_budget_bytes // bytes_per_image)
    return int(min(max_tile, max(1, (n + 1) // 2)))


def filter_forward(x):
    """x: (N, 1, H, W) float.  Returns (N, 1, H-2, W-2) f32 (valid 3x3 conv)."""
    n, c, h, w = x.shape
    assert c == 1, "Filter uses Conv2d(1, 1, 3)"
    assert h >= 3 and w >= 3, "valid 3x3 conv needs H, W >= 3"
    ho, wo = h - 2, w - 2

    # Pad spatial dims to lane/sublane-dense sizes; pad batch to a tile multiple.
    hp = _round_up(h, 8)
    wp = _round_up(w, 128)
    b_tile = _choose_batch_tile(n, hp, wp)
    n_pad = _round_up(n, b_tile)
    rows_per_step = b_tile * hp

    xs = x.reshape(n, h, w).astype(jnp.float32)
    xs = jnp.pad(xs, ((0, n_pad - n), (0, hp - h), (0, wp - w)))
    x2d = xs.reshape(n_pad * hp, wp)  # lane-dense 2-D slab

    y2d = pl.pallas_call(
        _laplacian3x3_kernel,
        out_shape=jax.ShapeDtypeStruct((n_pad * hp, wp), jnp.float32),
        grid=(n_pad // b_tile,),
        in_specs=[pl.BlockSpec((rows_per_step, wp), lambda i: (i, 0))],
        out_specs=pl.BlockSpec((rows_per_step, wp), lambda i: (i, 0)),
        compiler_params=pltpu.CompilerParams(
            dimension_semantics=("parallel",),
            vmem_limit_bytes=32 * 1024 * 1024,
        ),
    )(x2d)

    # The stencil is computed "centered": out[i, j] = y[i + 1, j + 1].
    y = y2d.reshape(n_pad, hp, wp)
    out = y[:n, 1:1 + ho, 1:1 + wo]
    return out.reshape(n, 1, ho, wo)


if __name__ == "__main__":
    # Deterministic input, NCHW like the PyTorch module (Conv2d(1, 1, 3)).
    key = jax.random.PRNGKey(0)
    x = jax.random.normal(key, (2, 1, 16, 16), dtype=jnp.float32)

    y = filter_forward(x)
    y = jax.block_until_ready(y)

    # Reference check against XLA's conv (same semantics as torch.nn.Conv2d
    # with weight = K and bias = 0, i.e. what Filter().setKernel(K) produces).
    w4 = jnp.asarray(K_NP).reshape(1, 1, 3, 3)  # OIHW
    y_ref = lax.conv_general_dilated(
        x, w4, window_strides=(1, 1), padding="VALID",
        dimension_numbers=("NCHW", "OIHW", "NCHW"))
    np.testing.assert_allclose(np.asarray(y), np.asarray(y_ref),
                               rtol=1e-5, atol=1e-5)

    print("KERNEL_OK")
</pallas_src>

<mosaic_0001>
module attributes {stable_mosaic.version = 11 : i64} {
  func.func @_laplacian3x3_kernel(%arg0: i32, %arg1: memref<16x128xf32, #tpu.memory_space<vmem>>, %arg2: memref<16x128xf32, #tpu.memory_space<vmem>>) attributes {dimension_semantics = [#tpu.dimension_semantics<parallel>], iteration_bounds = array<i64: 2>, scalar_prefetch = 0 : i64, scratch_operands = 0 : i64, tpu.core_type = #tpu.core_type<tc>, window_params = [{transform_indices = @transform_0, window_bounds = array<i64: 16, 128>}, {transform_indices = @transform_1, window_bounds = array<i64: 16, 128>}]} {
    %c0 = arith.constant 0 : index
    %c0_0 = arith.constant 0 : index
    %0 = vector.load %arg1[%c0, %c0_0] : memref<16x128xf32, #tpu.memory_space<vmem>>, vector<16x128xf32>
    %c1_i32 = arith.constant 1 : i32
    %1 = tpu.dynamic_rotate %0 by %c1_i32 dim 0 : vector<16x128xf32>, i32 -> vector<16x128xf32>
    %c15_i32 = arith.constant 15 : i32
    %2 = tpu.dynamic_rotate %0 by %c15_i32 dim 0 : vector<16x128xf32>, i32 -> vector<16x128xf32>
    %c1_i32_1 = arith.constant 1 : i32
    %3 = tpu.dynamic_rotate %0 by %c1_i32_1 dim 1 : vector<16x128xf32>, i32 -> vector<16x128xf32>
    %c127_i32 = arith.constant 127 : i32
    %4 = tpu.dynamic_rotate %0 by %c127_i32 dim 1 : vector<16x128xf32>, i32 -> vector<16x128xf32>
    %5 = arith.addf %1, %2 : vector<16x128xf32>
    %6 = arith.addf %3, %4 : vector<16x128xf32>
    %7 = arith.addf %5, %6 : vector<16x128xf32>
    %cst = arith.constant 4.000000e+00 : f32
    %8 = vector.broadcast %cst : f32 to vector<16x128xf32>
    %9 = arith.mulf %8, %0 : vector<16x128xf32>
    %10 = arith.subf %7, %9 : vector<16x128xf32>
    %c0_2 = arith.constant 0 : index
    %c0_3 = arith.constant 0 : index
    %11 = vector.load %arg2[%c0_2, %c0_3] : memref<16x128xf32, #tpu.memory_space<vmem>>, vector<16x128xf32>
    tpu.vector_store %arg2[%c0_2, %c0_3], %10 {strides = array<i32>} : memref<16x128xf32, #tpu.memory_space<vmem>>, vector<16x128xf32>,
    return
  }
  func.func @transform_0(%arg0: i32) -> (i32, i32) {
    %c0_i32 = arith.constant 0 : i32
    %c0_i32_0 = arith.constant 0 : i32
    return %arg0, %c0_i32 : i32, i32
  }
  func.func @transform_1(%arg0: i32) -> (i32, i32) {
    %c0_i32 = arith.constant 0 : i32
    %c0_i32_0 = arith.constant 0 : i32
    return %arg0, %c0_i32 : i32, i32
  }
}

</mosaic_0001>

<llo_original>
// kernel: tpu_custom_call.1
$region0: #{tpu_custom_call.1}
  #allocation0 [shape = 'u32[]', space=smem, size = 0x4, offset = 0x4, fixed_abs, tag = 'smem constant byte address 0x4 - core index']
  #allocation1 [shape = 'u32[144,128]{1,0:T(1,128)}', space=vmem, size = 0x12000, scoped, tag = 'internal scratch']
  %s0 = inlined_call_operand.hbm [shape: f32[32,128], index: 0, kind: input, shape index: {}]
  %s1 = inlined_call_operand.hbm [shape: f32[32,128], index: 1, kind: output, shape index: {}]
  %s2 = sld [smem:[#allocation0]]
  $region41: #{tpu_custom_call.1} parent=0
    _
  %s4 = ssub.s32 1, %s2
  %s5 = scalar_select 0, %s4, %s2
  $region1: #{tpu_custom_call.1} parent=0
    #allocation2 [shape = 'u8[16384]{0}', space=vmem, size = 0x4000, scoped, tag = 'input window, operand 0']
    #allocation3 [shape = 's32[2]{0}', space=sflag, size = 0x8, scoped, tag = 'scoped memory for tpu_custom_call.1']
    #allocation4 [shape = 's32[2]{0}', space=sflag, size = 0x8, scoped, tag = 'scoped memory for tpu_custom_call.1']
    #allocation5 [shape = 'u8[16384]{0}', space=vmem, size = 0x4000, scoped, tag = 'output window, operand 0']
    %6 = vsyncpa [#allocation3], 0
    %s7 = scalar_lea.sflag [#allocation3], 1
    %8 = vsyncpa %s7, 0
    %9 = vsyncpa [#allocation4], 0
    %s10 = scalar_lea.sflag [#allocation4], 1
    %11 = vsyncpa %s10, 0
    loop: start=0, step=1, limit=4
    $region2: #{tpu_custom_call.1} parent=1 // loop_pre_header
      _
    $region3: #{tpu_custom_call.1} parent=1 // loop_header
      %s13 = sphi 0, %s17
      %p14 = scmp.ge.s32.totalorder %s13, 4
      %s23 = sphi 0, %s25
      %s26 = sphi 0, %s23
      %s27 = sphi 0, %s26
      %s43 = sphi 0, %s27
      %s49 = sphi 0, %s51
      %s52 = sphi 0, %s49
      %s53 = sphi 0, %s52
      %s69 = sphi 0, %s53
    $region4: #{tpu_custom_call.1} parent=1 // loop_header_branch
      %16 = sbr.rel (%p14) target = $region8
    $region5: #{tpu_custom_call.1} parent=1 // loop_body
      %s18 = ssub.s32 %s13, 1
      %s19 = ssub.s32 %s13, 2
      %s20 = sadd.s32 %s13, 1
      %s21 = ssub.s32 %s13, %s20
      %p22 = scmp.eq.s32.totalorder %s21, 0
      %s24 = sadd.s32 %s23, 1
      %s25 = scalar_select %p22, %s23, %s24
      %p28 = pneg %p22
      %p29 = scmp.eq.s32.totalorder %s13, 1
      %p30 = por %p28, %p29
      %p31 = scmp.ne.s32.totalorder %s23, %s26
      %p32 = scmp.eq.s32.totalorder %s13, 0
      %p33 = por %p31, %p32
      %p34 = scmp.ne.s32.totalorder %s23, %s26
      %p35 = scmp.eq.s32.totalorder %s18, 1
      %p36 = por %p34, %p35
      %p37 = scmp.ne.s32.totalorder %s26, %s27
      %p38 = scmp.eq.s32.totalorder %s18, 0
      %p39 = por %p37, %p38
      %p40 = scmp.ne.s32.totalorder %s26, %s27
      %p41 = scmp.eq.s32.totalorder %s19, 1
      %p42 = por %p40, %p41
      %p44 = scmp.ne.s32.totalorder %s27, %s43
      %p45 = scmp.eq.s32.totalorder %s19, 0
      %p46 = por %p44, %p45
      %s47 = ssub.s32 %s13, %s20
      %p48 = scmp.eq.s32.totalorder %s47, 0
      %s50 = sadd.s32 %s49, 1
      %s51 = scalar_select %p48, %s49, %s50
      %p54 = pneg %p48
      %p55 = scmp.eq.s32.totalorder %s13, 1
      %p56 = por %p54, %p55
      %p57 = scmp.ne.s32.totalorder %s49, %s52
      %p58 = scmp.eq.s32.totalorder %s13, 0
      %p59 = por %p57, %p58
      %p60 = scmp.ne.s32.totalorder %s49, %s52
      %p61 = scmp.eq.s32.totalorder %s18, 1
      %p62 = por %p60, %p61
      %p63 = scmp.ne.s32.totalorder %s52, %s53
      %p64 = scmp.eq.s32.totalorder %s18, 0
      %p65 = por %p63, %p64
      %p66 = scmp.ne.s32.totalorder %s52, %s53
      %p67 = scmp.eq.s32.totalorder %s19, 1
      %p68 = por %p66, %p67
      %p70 = scmp.ne.s32.totalorder %s53, %s69
      %p71 = scmp.eq.s32.totalorder %s19, 0
      %p72 = por %p70, %p71
      %p73 = scmp.le.s32.totalorder 1, %s13
      %p74 = scmp.lt.s32.totalorder %s13, 3
      %p75 = pnand %p73, %p74
      %p76 = pneg %p75
      // Predicated region
      $region9: #{tpu_custom_call.1} parent=5 // pred_check
        _
      $region10: #{tpu_custom_call.1} parent=5 // pred_check_branch
        %78 = sbr.rel (%p75) target = $region12
      $region11: #{tpu_custom_call.1} parent=5 // pred_region
        %s79 = ssub.s32 %s13, 1
      $region12: #{tpu_custom_call.1} parent=5 // pred_fallthru
        _
      %p80 = scmp.lt.s32.totalorder %s13, 2
      // Predicated region
      $region13: #{tpu_custom_call.1} parent=5 // pred_check
        %p81 = pneg %p80
      $region14: #{tpu_custom_call.1} parent=5 // pred_check_branch
        %83 = sbr.rel (%p81) target = $region16
      $region15: #{tpu_custom_call.1} parent=5 // pred_region
        // Predicated region
        $region17: #{tpu_custom_call.1} parent=15 // pred_check
          %p84 = pneg %p33
        $region18: #{tpu_custom_call.1} parent=15 // pred_check_branch
          %86 = sbr.rel (%p84) target = $region20
        $region19: #{tpu_custom_call.1} parent=15 // pred_region
          %s87 = sand.u32 %s23, 1
          %s88 = scalar_lea.sflag [#allocation3], %s87
          %s89 = sand.u32 %s23, 1
          %s90 = smul.addr %s89, 16
          %s91 = scalar_lea.vmem [#allocation2], %s90
          %s92 = smul.u32 2, %s13
          %s94 = ssub.s32 256, 256
          %95 = vsyncadd %s88, %s94
          %s96 = smul.addr %s92, 128
          %s97 = scalar_lea.hbm %s0, %s96
          %s98 = sshll.u32 %s91, 4
          %s99 = int_to_ptr.vmem [resolvable:$true] %s98
          %104 = dma.hbm_to_vmem [thread:$0]  %s97, 256, %s99, %s88, 128, 128, 8
        $region20: #{tpu_custom_call.1} parent=15 // pred_fallthru
          _
      $region16: #{tpu_custom_call.1} parent=5 // pred_fallthru
        _
      %p105 = scmp.le.s32.totalorder 1, %s13
      %p106 = scmp.lt.s32.totalorder %s13, 3
      %p107 = pnand %p105, %p106
      %p108 = pneg %p107
      // Predicated region
      $region21: #{tpu_custom_call.1} parent=5 // pred_check
        _
      $region22: #{tpu_custom_call.1} parent=5 // pred_check_branch
        %110 = sbr.rel (%p107) target = $region24
      $region23: #{tpu_custom_call.1} parent=5 // pred_region
        %s111 = ssub.s32 %s13, 1
        %s112 = sand.u32 %s26, 1
        %s113 = scalar_lea.sflag [#allocation3], %s112
        %s114 = sand.u32 %s26, 1
        %s115 = smul.addr %s114, 16
        %s116 = scalar_lea.vmem [#allocation2], %s115
        // Predicated region
        $region25: #{tpu_custom_call.1} parent=23 // pred_check
          %p117 = pneg %p39
        $region26: #{tpu_custom_call.1} parent=23 // pred_check_branch
          %119 = sbr.rel (%p117) target = $region28
        $region27: #{tpu_custom_call.1} parent=23 // pred_region
          %120 = dma.done %s113, 256
        $region28: #{tpu_custom_call.1} parent=23 // pred_fallthru
          _
        %s121 = sand.u32 %s26, 1
        %s122 = scalar_lea.sflag [#allocation3], %s121
        %s123 = sand.u32 %s26, 1
        %s124 = smul.addr %s123, 16
        %s125 = scalar_lea.vmem [#allocation2], %s124
        %p126 = pneg %p39
        %p127 = pneg %p36
        %p128 = pneg %p65
        %p129 = pneg %p62
        %s130 = sand.u32 %s52, 1
        %s131 = scalar_lea.sflag [#allocation4], %s130
        %s132 = sand.u32 %s52, 1
        %s133 = smul.addr %s132, 16
        %s134 = scalar_lea.vmem [#allocation5], %s133
        %s135 = smul.u32 2, %s18
        %s136 = smul.u32 2, %s18
        %v137 = vld [vmem:[%s116] sm:$0xff]
        %v138 = vld [vmem:[%s116 + $0x8] sm:$0xff]
        %v139 = vrot.slane %v137, 7
        %v140 = vrot.slane %v138, 7
        %v141 = vlaneseq
        %v142 = vshrl.u32 %v141, 7
        %vm143 = vcmp.lt.s32.totalorder %v142, 1
        %v144 = vsel %vm143, %v139, %v140
        %v145 = vsel %vm143, %v140, %v139
        %v146 = vrot.slane %v137, 1
        %v147 = vrot.slane %v138, 1
        %vm148 = vcmp.lt.s32.totalorder %v142, 7
        %v149 = vsel %vm148, %v146, %v147
        %v150 = vsel %vm148, %v147, %v146
        %151 = vrot.lane.b32.xlu0 %v137, 1
        %v152 = vpop.permute.xlu0 %151
        %153 = vrot.lane.b32.xlu0 %v138, 1
        %v154 = vpop.permute.xlu0 %153
        %155 = vrot.lane.b32.xlu0 %v137, 127
        %v156 = vpop.permute.xlu0 %155
        %157 = vrot.lane.b32.xlu0 %v138, 127
        %v158 = vpop.permute.xlu0 %157
        %v159 = vadd.f32 %v145, %v149
        %v160 = vadd.f32 %v144, %v150
        %v161 = vadd.f32 %v152, %v156
        %v162 = vadd.f32 %v154, %v158
        %v163 = vadd.f32 %v159, %v161
        %v164 = vadd.f32 %v160, %v162
        %v165 = vmul.f32 %v137, 4.0
        %v166 = vmul.f32 %v138, 4.0
        %v167 = vsub.f32 %v163, %v165
        %v168 = vsub.f32 %v164, %v166
        %169 = vst [vmem:[%s134] sm:$0xff] %v167
        %170 = vst [vmem:[%s134 + $0x8] sm:$0xff] %v168
        %s171 = sand.u32 %s52, 1
        %s172 = scalar_lea.sflag [#allocation4], %s171
        %s173 = sand.u32 %s52, 1
        %s174 = smul.addr %s173, 16
        %s175 = scalar_lea.vmem [#allocation5], %s174
        // Predicated region
        $region29: #{tpu_custom_call.1} parent=23 // pred_check
          %p176 = pneg %p62
        $region30: #{tpu_custom_call.1} parent=23 // pred_check_branch
          %178 = sbr.rel (%p176) target = $region32
        $region31: #{tpu_custom_call.1} parent=23 // pred_region
          %s179 = smul.u32 2, %s18
          %s181 = ssub.s32 256, 256
          %182 = vsyncadd %s172, %s181
          %s183 = smul.addr %s179, 128
          %s184 = scalar_lea.hbm %s1, %s183
          %s185 = sshll.u32 %s175, 4
          %s186 = int_to_ptr.vmem [resolvable:$true] %s185
          %191 = dma.vmem_to_hbm [thread:$0]  %s186, 256, %s184, %s172, 128, 128, 8
        $region32: #{tpu_custom_call.1} parent=23 // pred_fallthru
          _
      $region24: #{tpu_custom_call.1} parent=5 // pred_fallthru
        _
      %p192 = scmp.le.s32.totalorder 2, %s13
      // Predicated region
      $region33: #{tpu_custom_call.1} parent=5 // pred_check
        %p193 = pneg %p192
      $region34: #{tpu_custom_call.1} parent=5 // pred_check_branch
        %195 = sbr.rel (%p193) target = $region36
      $region35: #{tpu_custom_call.1} parent=5 // pred_region
        %s196 = ssub.s32 %s13, 2
        // Predicated region
        $region37: #{tpu_custom_call.1} parent=35 // pred_check
          %p197 = pneg %p68
        $region38: #{tpu_custom_call.1} parent=35 // pred_check_branch
          %199 = sbr.rel (%p197) target = $region40
        $region39: #{tpu_custom_call.1} parent=35 // pred_region
          %s200 = sand.u32 %s53, 1
          %s201 = scalar_lea.sflag [#allocation4], %s200
          %s202 = sand.u32 %s53, 1
          %s203 = smul.addr %s202, 16
          %s204 = scalar_lea.vmem [#allocation5], %s203
          %205 = dma.done %s201, 256
        $region40: #{tpu_custom_call.1} parent=35 // pred_fallthru
          _
      $region36: #{tpu_custom_call.1} parent=5 // pred_fallthru
        _
    $region6: #{tpu_custom_call.1} parent=1 // loop_footer
      %s17 = sadd.s32 1, %s13
    $region7: #{tpu_custom_call.1} parent=1 // loop_footer_branch
      %12 = sbr.rel target = $region3
    $region8: #{tpu_custom_call.1} parent=1 // loop_exit
      _
    %206 = vsyncpa [#allocation3], 1
    %s207 = scalar_lea.sflag [#allocation3], 1
    %208 = vsyncpa %s207, 1
    %209 = vsyncpa [#allocation4], 1
    %s210 = scalar_lea.sflag [#allocation4], 1
    %211 = vsyncpa %s210, 1

</llo_original>
